<compile_context>
chip_gen: v7x
topology: tpu7x:2x2x1
jax: 0.10.0
libtpu: 0.0.40
codegen_flags: <defaults>
</compile_context>

<pallas_src>
import numpy as np
import jax
import jax.numpy as jnp
from jax.experimental import pallas as pl
from jax.experimental.pallas import tpu as pltpu


def _img_freq_kernel(x_ref, fhc_ref, fwc_ref, mask_ref, sel_ref,
                     fft_ref, ratio_ref):
    H = fhc_ref.shape[1]          # fhc is (2H, H)
    PW = x_ref.shape[1]           # stacked plane width B*C*W

    # Left complex DFT: [FH'_re ; FH'_im] @ x_stack (Hamming + fftshift folded
    # into the matrix). bf16 operands, f32 accumulation on the MXU.
    a = jnp.dot(fhc_ref[...], x_ref[...], preferred_element_type=jnp.float32)

    # Right complex DFT: per-plane block-diagonal [blkdiag(FW'_re) | blkdiag(FW'_im)].
    m = jnp.dot(a.astype(jnp.bfloat16), fwc_ref[...],
                preferred_element_type=jnp.float32)

    # Quadrant recombination: Y_re = Are@FWre - Aim@FWim, Y_im = Are@FWim + Aim@FWre.
    y_re = m[:H, :PW] - m[H:, PW:]
    y_im = m[:H, PW:] + m[H:, :PW]

    # Lane-dense [re ; im] output slab.
    fft_ref[0] = y_re
    fft_ref[1] = y_im

    # Per-batch energy ratio. 1/(H*W) normalization cancels in the ratio.
    mag2 = y_re * y_re + y_im * y_im
    tot_cols = jnp.sum(mag2, axis=0, keepdims=True)                   # (1, PW)
    band_cols = jnp.sum(mag2 * mask_ref[...], axis=0, keepdims=True)  # (1, PW)
    tot = jnp.sum(sel_ref[...] * tot_cols, axis=1, keepdims=True)     # (B, 1)
    band = jnp.sum(sel_ref[...] * band_cols, axis=1, keepdims=True)   # (B, 1)
    ratio_ref[...] = band / tot


def make_img_freq_loss(img_shape, target_period, band_width=2):
    B, C, H, W = img_shape
    assert H == W
    P = B * C
    PW = P * W

    # Periodic Hamming window (torch.hamming_window default: periodic=True).
    hx = 0.54 - 0.46 * np.cos(2.0 * np.pi * np.arange(H) / H)
    hy = 0.54 - 0.46 * np.cos(2.0 * np.pi * np.arange(W) / W)

    # DFT matrices with fftshift (row/col roll) and Hamming window folded in.
    FH = np.exp(-2j * np.pi * np.outer(np.arange(H), np.arange(H)) / H)
    FH = np.roll(FH, H // 2, axis=0) * hx[None, :]                    # (H, H)
    FW = np.exp(-2j * np.pi * np.outer(np.arange(W), np.arange(W)) / W)
    FW = np.roll(FW, W // 2, axis=1) * hy[:, None]                    # (W, W)

    fhc = np.concatenate([FH.real, FH.imag], axis=0).astype(np.float32)  # (2H, H)

    # Right matrix: per-plane block-diagonal, [blkdiag(FW.re) | blkdiag(FW.im)].
    fwc = np.zeros((PW, 2 * PW), np.float32)
    for p in range(P):
        rows = slice(p * W, (p + 1) * W)
        fwc[rows, p * W:(p + 1) * W] = FW.real
        fwc[rows, PW + p * W:PW + (p + 1) * W] = FW.imag

    # In-band mask (fftshifted coordinates), tiled across the stacked planes.
    tp_idx = H // target_period
    inner, outer = tp_idx - band_width, tp_idx + band_width
    ii, jj = np.meshgrid(np.arange(H), np.arange(W), indexing="ij")
    r2 = (ii - H // 2) ** 2 + (jj - W // 2) ** 2
    mask = np.logical_and(r2 > inner ** 2, r2 < outer ** 2).astype(np.float32)
    mask_t = np.tile(mask, (1, P))                                    # (H, PW)

    # Per-batch column selector: sel[b, p*W + j] = 1 iff plane p is in batch b.
    sel = np.zeros((B, PW), np.float32)
    for p in range(P):
        sel[p // C, p * W:(p + 1) * W] = 1.0

    fhc_j = jnp.asarray(fhc, jnp.bfloat16)
    fwc_j = jnp.asarray(fwc, jnp.bfloat16)
    mask_j = jnp.asarray(mask_t, jnp.float32)
    sel_j = jnp.asarray(sel, jnp.float32)

    call = pl.pallas_call(
        _img_freq_kernel,
        out_shape=(
            jax.ShapeDtypeStruct((2, H, PW), jnp.float32),   # [re ; im] slab
            jax.ShapeDtypeStruct((B, 1), jnp.float32),       # per-batch ratio
        ),
        grid=(1,),
        in_specs=[
            pl.BlockSpec((H, PW), lambda i: (0, 0)),         # lane-stacked image
            pl.BlockSpec((2 * H, H), lambda i: (0, 0)),      # [FH_re ; FH_im]
            pl.BlockSpec((PW, 2 * PW), lambda i: (0, 0)),    # blkdiag [FW_re | FW_im]
            pl.BlockSpec((H, PW), lambda i: (0, 0)),         # tiled band mask
            pl.BlockSpec((B, PW), lambda i: (0, 0)),         # batch selector
        ],
        out_specs=(
            pl.BlockSpec((2, H, PW), lambda i: (0, 0, 0)),
            pl.BlockSpec((B, 1), lambda i: (0, 0)),
        ),
        compiler_params=pltpu.CompilerParams(
            dimension_semantics=("arbitrary",)),
    )

    @jax.jit
    def forward(img):
        # (B, C, H, W) -> (H, B*C*W): stack planes along lanes; bf16 MXU operand.
        x = jnp.transpose(img, (2, 0, 1, 3)).reshape(H, PW).astype(jnp.bfloat16)
        fft_slab, ratio = call(x, fhc_j, fwc_j, mask_j, sel_j)
        y = fft_slab.reshape(2, H, B, C, W).transpose(0, 2, 3, 1, 4)  # (2,B,C,H,W)
        img_fft = jax.lax.complex(y[0], y[1])
        return ratio[:, 0], img_fft   # matches (energy_ratio, img_fft)

    return forward


if __name__ == "__main__":
    B, C, H, W = 2, 4, 16, 16
    target_period, band_width = 4.0, 2

    key = jax.random.PRNGKey(0)
    img = jax.random.normal(key, (B, C, H, W), dtype=jnp.float32)

    forward = make_img_freq_loss((B, C, H, W), target_period, band_width)
    energy_ratio, img_fft = forward(img)
    jax.block_until_ready((energy_ratio, img_fft))

    # Pure NumPy reference (mirrors the PyTorch forward; spatial fftshift).
    n = np.arange(H)
    hx = 0.54 - 0.46 * np.cos(2 * np.pi * n / H)
    hamm_np = np.outer(hx, hx).astype(np.float32)
    ref_fft = np.fft.fftshift(np.fft.fft2(np.asarray(img) * hamm_np), axes=(-2, -1))
    mag2 = np.abs(ref_fft) ** 2
    ii, jj = np.meshgrid(np.arange(H), np.arange(W), indexing="ij")
    r2 = (ii - H // 2) ** 2 + (jj - W // 2) ** 2
    tp_idx = H // target_period
    mask_np = np.logical_and(r2 > (tp_idx - band_width) ** 2,
                             r2 < (tp_idx + band_width) ** 2)
    total = mag2.sum(axis=(1, 2, 3)) / (H * W)
    band = (mag2 * mask_np).sum(axis=(1, 2, 3)) / (H * W)
    ref_ratio = band / total

    assert np.allclose(np.asarray(energy_ratio), ref_ratio, rtol=2e-2, atol=2e-2)
    assert np.allclose(np.asarray(img_fft), ref_fft, rtol=2e-2, atol=3.5e-1)
    print("KERNEL_OK")
</pallas_src>

<mosaic_0001>
module attributes {stable_mosaic.version = 11 : i64} {
  func.func @_img_freq_kernel(%arg0: i32, %arg1: memref<16x128xbf16, #tpu.memory_space<vmem>>, %arg2: memref<32x16xbf16, #tpu.memory_space<vmem>>, %arg3: memref<128x256xbf16, #tpu.memory_space<vmem>>, %arg4: memref<16x128xf32, #tpu.memory_space<vmem>>, %arg5: memref<2x128xf32, #tpu.memory_space<vmem>>, %arg6: memref<2x16x128xf32, #tpu.memory_space<vmem>>, %arg7: memref<2x1xf32, #tpu.memory_space<vmem>>) attributes {dimension_semantics = [#tpu.dimension_semantics<arbitrary>], iteration_bounds = array<i64: 1>, scalar_prefetch = 0 : i64, scratch_operands = 0 : i64, tpu.core_type = #tpu.core_type<tc>, window_params = [{pipeline_mode = #tpu.pipeline_mode<synchronous>, transform_indices = @transform_0, window_bounds = array<i64: 16, 128>}, {pipeline_mode = #tpu.pipeline_mode<synchronous>, transform_indices = @transform_1, window_bounds = array<i64: 32, 16>}, {pipeline_mode = #tpu.pipeline_mode<synchronous>, transform_indices = @transform_2, window_bounds = array<i64: 128, 256>}, {pipeline_mode = #tpu.pipeline_mode<synchronous>, transform_indices = @transform_3, window_bounds = array<i64: 16, 128>}, {pipeline_mode = #tpu.pipeline_mode<synchronous>, transform_indices = @transform_4, window_bounds = array<i64: 2, 128>}, {pipeline_mode = #tpu.pipeline_mode<synchronous>, transform_indices = @transform_5, window_bounds = array<i64: 2, 16, 128>}, {pipeline_mode = #tpu.pipeline_mode<synchronous>, transform_indices = @transform_6, window_bounds = array<i64: 2, 1>}]} {
    %c0 = arith.constant 0 : index
    %c0_0 = arith.constant 0 : index
    %0 = vector.load %arg2[%c0, %c0_0] : memref<32x16xbf16, #tpu.memory_space<vmem>>, vector<32x16xbf16>
    %c0_1 = arith.constant 0 : index
    %c0_2 = arith.constant 0 : index
    %1 = vector.load %arg1[%c0_1, %c0_2] : memref<16x128xbf16, #tpu.memory_space<vmem>>, vector<16x128xbf16>
    %cst = arith.constant dense<0.000000e+00> : vector<32x128xf32>
    %2 = tpu.matmul %0, %1, %cst {dimension_numbers = #tpu.dot_dimension_numbers<[1], [0], [0], [1], [0, 0, 1, 1], [], []>} : vector<32x16xbf16>, vector<16x128xbf16>, vector<32x128xf32> -> vector<32x128xf32>
    %3 = arith.truncf %2 : vector<32x128xf32> to vector<32x128xbf16>
    %c0_3 = arith.constant 0 : index
    %c0_4 = arith.constant 0 : index
    %4 = vector.load %arg3[%c0_3, %c0_4] : memref<128x256xbf16, #tpu.memory_space<vmem>>, vector<128x256xbf16>
    %cst_5 = arith.constant dense<0.000000e+00> : vector<32x256xf32>
    %5 = tpu.matmul %3, %4, %cst_5 {dimension_numbers = #tpu.dot_dimension_numbers<[1], [0], [0], [1], [0, 0, 1, 1], [], []>} : vector<32x128xbf16>, vector<128x256xbf16>, vector<32x256xf32> -> vector<32x256xf32>
    %6 = vector.extract_strided_slice %5 {offsets = [0, 0], sizes = [16, 128], strides = [1, 1]} : vector<32x256xf32> to vector<16x128xf32>
    %7 = vector.extract_strided_slice %5 {offsets = [16, 128], sizes = [16, 128], strides = [1, 1]} : vector<32x256xf32> to vector<16x128xf32>
    %8 = arith.subf %6, %7 : vector<16x128xf32>
    %9 = vector.extract_strided_slice %5 {offsets = [0, 128], sizes = [16, 128], strides = [1, 1]} : vector<32x256xf32> to vector<16x128xf32>
    %10 = vector.extract_strided_slice %5 {offsets = [16, 0], sizes = [16, 128], strides = [1, 1]} : vector<32x256xf32> to vector<16x128xf32>
    %11 = arith.addf %9, %10 : vector<16x128xf32>
    %c0_6 = arith.constant 0 : index
    %c0_7 = arith.constant 0 : index
    %c0_8 = arith.constant 0 : index
    %12 = vector.load %arg6[%c0_6, %c0_7, %c0_8] : memref<2x16x128xf32, #tpu.memory_space<vmem>>, vector<1x16x128xf32>
    %13 = vector.shape_cast %12 : vector<1x16x128xf32> to vector<16x128xf32>
    %14 = vector.shape_cast %8 : vector<16x128xf32> to vector<1x16x128xf32>
    tpu.vector_store %arg6[%c0_6, %c0_7, %c0_8], %14 {strides = array<i32>} : memref<2x16x128xf32, #tpu.memory_space<vmem>>, vector<1x16x128xf32>,
    %c1 = arith.constant 1 : index
    %c0_9 = arith.constant 0 : index
    %c0_10 = arith.constant 0 : index
    %15 = vector.load %arg6[%c1, %c0_9, %c0_10] : memref<2x16x128xf32, #tpu.memory_space<vmem>>, vector<1x16x128xf32>
    %16 = vector.shape_cast %15 : vector<1x16x128xf32> to vector<16x128xf32>
    %17 = vector.shape_cast %11 : vector<16x128xf32> to vector<1x16x128xf32>
    tpu.vector_store %arg6[%c1, %c0_9, %c0_10], %17 {strides = array<i32>} : memref<2x16x128xf32, #tpu.memory_space<vmem>>, vector<1x16x128xf32>,
    %18 = arith.mulf %8, %8 : vector<16x128xf32>
    %19 = arith.mulf %11, %11 : vector<16x128xf32>
    %20 = arith.addf %18, %19 : vector<16x128xf32>
    %cst_11 = arith.constant dense<0.000000e+00> : vector<128xf32>
    %21 = vector.multi_reduction <add>, %20, %cst_11 [0] : vector<16x128xf32> to vector<128xf32>
    %22 = vector.shape_cast %21 : vector<128xf32> to vector<1x128xf32>
    %c0_12 = arith.constant 0 : index
    %c0_13 = arith.constant 0 : index
    %23 = vector.load %arg4[%c0_12, %c0_13] : memref<16x128xf32, #tpu.memory_space<vmem>>, vector<16x128xf32>
    %24 = arith.mulf %20, %23 : vector<16x128xf32>
    %cst_14 = arith.constant dense<0.000000e+00> : vector<128xf32>
    %25 = vector.multi_reduction <add>, %24, %cst_14 [0] : vector<16x128xf32> to vector<128xf32>
    %26 = vector.shape_cast %25 : vector<128xf32> to vector<1x128xf32>
    %c0_15 = arith.constant 0 : index
    %c0_16 = arith.constant 0 : index
    %27 = vector.load %arg5[%c0_15, %c0_16] : memref<2x128xf32, #tpu.memory_space<vmem>>, vector<2x128xf32>
    %28 = vector.broadcast %22 : vector<1x128xf32> to vector<2x128xf32>
    %29 = arith.mulf %27, %28 : vector<2x128xf32>
    %cst_17 = arith.constant dense<0.000000e+00> : vector<2xf32>
    %30 = vector.multi_reduction <add>, %29, %cst_17 [1] : vector<2x128xf32> to vector<2xf32>
    %31 = vector.shape_cast %30 : vector<2xf32> to vector<2x1xf32>
    %c0_18 = arith.constant 0 : index
    %c0_19 = arith.constant 0 : index
    %32 = vector.load %arg5[%c0_18, %c0_19] : memref<2x128xf32, #tpu.memory_space<vmem>>, vector<2x128xf32>
    %33 = vector.broadcast %26 : vector<1x128xf32> to vector<2x128xf32>
    %34 = arith.mulf %32, %33 : vector<2x128xf32>
    %cst_20 = arith.constant dense<0.000000e+00> : vector<2xf32>
    %35 = vector.multi_reduction <add>, %34, %cst_20 [1] : vector<2x128xf32> to vector<2xf32>
    %36 = vector.shape_cast %35 : vector<2xf32> to vector<2x1xf32>
    %37 = arith.divf %36, %31 : vector<2x1xf32>
    %c0_21 = arith.constant 0 : index
    %c0_22 = arith.constant 0 : index
    %38 = vector.load %arg7[%c0_21, %c0_22] : memref<2x1xf32, #tpu.memory_space<vmem>>, vector<2x1xf32>
    tpu.vector_store %arg7[%c0_21, %c0_22], %37 {strides = array<i32>} : memref<2x1xf32, #tpu.memory_space<vmem>>, vector<2x1xf32>,
    return
  }
  func.func @transform_0(%arg0: i32) -> (i32, i32) {
    %c0_i32 = arith.constant 0 : i32
    %c0_i32_0 = arith.constant 0 : i32
    %c0_i32_1 = arith.constant 0 : i32
    return %c0_i32, %c0_i32_0 : i32, i32
  }
  func.func @transform_1(%arg0: i32) -> (i32, i32) {
    %c0_i32 = arith.constant 0 : i32
    %c0_i32_0 = arith.constant 0 : i32
    %c0_i32_1 = arith.constant 0 : i32
    return %c0_i32, %c0_i32_0 : i32, i32
  }
  func.func @transform_2(%arg0: i32) -> (i32, i32) {
    %c0_i32 = arith.constant 0 : i32
    %c0_i32_0 = arith.constant 0 : i32
    %c0_i32_1 = arith.constant 0 : i32
    return %c0_i32, %c0_i32_0 : i32, i32
  }
  func.func @transform_3(%arg0: i32) -> (i32, i32) {
    %c0_i32 = arith.constant 0 : i32
    %c0_i32_0 = arith.constant 0 : i32
    %c0_i32_1 = arith.constant 0 : i32
    return %c0_i32, %c0_i32_0 : i32, i32
  }
  func.func @transform_4(%arg0: i32) -> (i32, i32) {
    %c0_i32 = arith.constant 0 : i32
    %c0_i32_0 = arith.constant 0 : i32
    %c0_i32_1 = arith.constant 0 : i32
    return %c0_i32, %c0_i32_0 : i32, i32
  }
  func.func @transform_5(%arg0: i32) -> (i32, i32, i32) {
    %c0_i32 = arith.constant 0 : i32
    %c0_i32_0 = arith.constant 0 : i32
    %c0_i32_1 = arith.constant 0 : i32
    %c0_i32_2 = arith.constant 0 : i32
    return %c0_i32, %c0_i32_0, %c0_i32_1 : i32, i32, i32
  }
  func.func @transform_6(%arg0: i32) -> (i32, i32) {
    %c0_i32 = arith.constant 0 : i32
    %c0_i32_0 = arith.constant 0 : i32
    %c0_i32_1 = arith.constant 0 : i32
    return %c0_i32, %c0_i32_0 : i32, i32
  }
}

</mosaic_0001>

<llo_original>
// kernel: custom-call
$region0: #{custom-call}
  %s0 = inlined_call_operand.vmem [shape: f32[2,4,16,16], index: 0, kind: input, shape index: {}]
  %s1 = inlined_call_operand.vmem [shape: f32[2,4,16,16], index: 1, kind: input, shape index: {}]
  %s2 = inlined_call_operand.hbm [shape: c64[2,4,16,16], index: 2, kind: output, shape index: {}]
  %s3 = scalar_lea.hbm %s2, 2048
  $region1: #{custom-call} parent=0
    #allocation0 [shape = 's32[1]{0}', space=sflag, size = 0x4, scoped, tag = 'scoped memory for custom-call']
    %4 = vsyncpa [#allocation0], 0
    %s5 = sshll.u32 %s0, 4
    %s6 = int_to_ptr.vmem [resolvable:$true] %s5
    %8 = dma.vmem_to_hbm [thread:$0]  %s6, 2048, %s2, [#allocation0]
    %9 = dma.done [#allocation0], 2048
    %10 = vsyncpa [#allocation0], 1
  $region2: #{custom-call} parent=0
    #allocation1 [shape = 's32[1]{0}', space=sflag, size = 0x4, scoped, tag = 'scoped memory for custom-call']
    %11 = vsyncpa [#allocation1], 0
    %s12 = sshll.u32 %s1, 4
    %s13 = int_to_ptr.vmem [resolvable:$true] %s12
    %15 = dma.vmem_to_hbm [thread:$0]  %s13, 2048, %s3, [#allocation1]
    %16 = dma.done [#allocation1], 2048
    %17 = vsyncpa [#allocation1], 1

// kernel: forward.1
$region0: #{forward.1}
  #allocation0 [shape = 'u32[]', space=smem, size = 0x4, offset = 0x4, fixed_abs, tag = 'smem constant byte address 0x4 - core index']
  #allocation1 [shape = 'u32[144,128]{1,0:T(1,128)}', space=vmem, size = 0x12000, scoped, tag = 'internal scratch']
  %s0 = inlined_call_operand.vmem [shape: bf16[16,128], index: 0, kind: input, shape index: {}]
  %s1 = inlined_call_operand.vmem [shape: bf16[32,16], index: 1, kind: input, shape index: {}]
  %s2 = inlined_call_operand.vmem [shape: bf16[128,256], index: 2, kind: input, shape index: {}]
  %s3 = inlined_call_operand.vmem [shape: f32[16,128], index: 3, kind: input, shape index: {}]
  %s4 = inlined_call_operand.vmem [shape: f32[2,128], index: 4, kind: input, shape index: {}]
  %s5 = inlined_call_operand.vmem [shape: f32[2,16,128], index: 5, kind: output, shape index: {0}]
  %s6 = inlined_call_operand.vmem [shape: f32[2,1], index: 6, kind: output, shape index: {1}]
  %7 = xla_tuple %s5, %s6
  %s8 = sld [smem:[#allocation0]]
  $region38: #{forward.1} parent=0
    _
  %s10 = ssub.s32 1, %s8
  %s11 = scalar_select 0, %s10, %s8
  // Predicated region
  $region2: #{forward.1} parent=0 // pred_check
    _
  $region3: #{forward.1} parent=0 // pred_check_branch
    %13 = sbr.rel (0) target = $region5
  $region4: #{forward.1} parent=0 // pred_region
    _
  $region5: #{forward.1} parent=0 // pred_fallthru
    _
  // Predicated region
  $region6: #{forward.1} parent=0 // pred_check
    _
  $region7: #{forward.1} parent=0 // pred_check_branch
    %15 = sbr.rel (0) target = $region9
  $region8: #{forward.1} parent=0 // pred_region
    _
  $region9: #{forward.1} parent=0 // pred_fallthru
    _
  // Predicated region
  $region10: #{forward.1} parent=0 // pred_check
    _
  $region11: #{forward.1} parent=0 // pred_check_branch
    %17 = sbr.rel (0) target = $region13
  $region12: #{forward.1} parent=0 // pred_region
    _
  $region13: #{forward.1} parent=0 // pred_fallthru
    _
  // Predicated region
  $region14: #{forward.1} parent=0 // pred_check
    _
  $region15: #{forward.1} parent=0 // pred_check_branch
    %19 = sbr.rel (0) target = $region17
  $region16: #{forward.1} parent=0 // pred_region
    _
  $region17: #{forward.1} parent=0 // pred_fallthru
    _
  // Predicated region
  $region18: #{forward.1} parent=0 // pred_check
    _
  $region19: #{forward.1} parent=0 // pred_check_branch
    %21 = sbr.rel (0) target = $region21
  $region20: #{forward.1} parent=0 // pred_region
    _
  $region21: #{forward.1} parent=0 // pred_fallthru
    _
  %v23 = vld [vmem:[%s1] sm:$0xf]
  %v24 = vld [vmem:[%s1 + $0x4] sm:$0xf]
  %v25 = vld [vmem:[%s1 + $0x8] sm:$0xf]
  %v26 = vld [vmem:[%s1 + $0xc] sm:$0xf]
  %v27 = vld [vmem:[%s0] sm:$0xf]
  %v28 = vld [vmem:[%s0 + $0x4] sm:$0xf]
  %v33 = vunpack.c.l.b16 %v23
  %v34 = vunpack.c.l.b16 %v24
  %v35 = vunpack.c.l.b16 %v25
  %v36 = vunpack.c.l.b16 %v26
  %v37 = vpack.c.b16 %v34, %v33
  %v38 = vpack.c.b16 %v36, %v35
  %v41 = vunpack.c.l.b16 %v27
  %v42 = vunpack.c.l.b16 %v28
  %v43 = vpack.c.b16 %v42, %v41
  %vm45 = vcmask 130048
  %v47 = vsel %vm45, %v37, 0
  %v50 = vsel %vm45, %v38, 0
  %52 = vmatprep.subr.bf16.mxu0 0
  %53 = vmatpush1.bf16.msra.mxu0 %v43
  %54 = vmatprep.subr.bf16.mxu0 0
  %55 = vmatpush1.bf16.msra.mxu0 0
  %56 = vmatprep.subr.bf16.mxu0 0
  %57 = vmatpush1.bf16.msra.mxu0 0
  %58 = vmatprep.subr.bf16.mxu0 0
  %59 = vmatpush1.bf16.msra.mxu0 0
  %60 = vmatprep.subr.bf16.mxu0 0
  %61 = vmatpush1.bf16.msra.mxu0 0
  %62 = vmatprep.subr.bf16.mxu0 0
  %63 = vmatpush1.bf16.msra.mxu0 0
  %64 = vmatprep.subr.bf16.mxu0 0
  %65 = vmatpush1.bf16.msra.mxu0 0
  %66 = vmatprep.subr.bf16.mxu0 0
  %67 = vmatpush1.bf16.msra.mxu0 0
  %68 = vmatprep.subr.bf16.mxu0 0
  %69 = vmatpush1.bf16.msra.mxu0 0
  %70 = vmatprep.subr.bf16.mxu0 0
  %71 = vmatpush1.bf16.msra.mxu0 0
  %72 = vmatprep.subr.bf16.mxu0 0
  %73 = vmatpush1.bf16.msra.mxu0 0
  %74 = vmatprep.subr.bf16.mxu0 0
  %75 = vmatpush1.bf16.msra.mxu0 0
  %76 = vmatprep.subr.bf16.mxu0 0
  %77 = vmatpush1.bf16.msra.mxu0 0
  %78 = vmatprep.subr.bf16.mxu0 0
  %79 = vmatpush1.bf16.msra.mxu0 0
  %80 = vmatprep.subr.bf16.mxu0 0
  %81 = vmatpush1.bf16.msra.mxu0 0
  %82 = vmatprep.subr.bf16.mxu0 0
  %83 = vmatpush1.bf16.msra.mxu0 0
  %84 = vmatprep.mubr.bf16.mxu0 0
  %85 = vmatmul.mubr.bf16.gmra.mrb[0].mxu0 %v47
  %v86 = vpop.f32.mrb[0].mxu0
  %v87 = vadd.f32 0.0, %v86
  %v88 = vpop.f32.mrb[0].mxu0
  %v89 = vpop.f32.mrb[0].mxu0
  %v90 = vadd.f32 0.0, %v89
  %v91 = vpop.f32.mrb[0].mxu0
  %92 = vmatprep.mubr.bf16.mxu0 0
  %93 = vmatmul.mubr.bf16.gmra.mrb[0].mxu0 %v50
  %v94 = vpop.f32.mrb[0].mxu0
  %v95 = vadd.f32 0.0, %v94
  %v96 = vpop.f32.mrb[0].mxu0
  %v97 = vpop.f32.mrb[0].mxu0
  %v98 = vadd.f32 0.0, %v97
  %v99 = vpop.f32.mrb[0].mxu0
  %100 = vdwg.mxu0
  %v101 = vpack.c.bf16 %v90, %v87
  %v102 = vpack.c.bf16 %v98, %v95
  %v103 = vld [vmem:[%s2] sm:$0xff]
  %v104 = vld [vmem:[%s2 + $0x8] sm:$0xff]
  %v105 = vld [vmem:[%s2 + $0x10] sm:$0xff]
  %v106 = vld [vmem:[%s2 + $0x18] sm:$0xff]
  %v107 = vld [vmem:[%s2 + $0x20] sm:$0xff]
  %v108 = vld [vmem:[%s2 + $0x28] sm:$0xff]
  %v109 = vld [vmem:[%s2 + $0x30] sm:$0xff]
  %v110 = vld [vmem:[%s2 + $0x38] sm:$0xff]
  %v111 = vld [vmem:[%s2 + $0x40] sm:$0xff]
  %v112 = vld [vmem:[%s2 + $0x48] sm:$0xff]
  %v113 = vld [vmem:[%s2 + $0x50] sm:$0xff]
  %v114 = vld [vmem:[%s2 + $0x58] sm:$0xff]
  %v115 = vld [vmem:[%s2 + $0x60] sm:$0xff]
  %v116 = vld [vmem:[%s2 + $0x68] sm:$0xff]
  %v117 = vld [vmem:[%s2 + $0x70] sm:$0xff]
  %v118 = vld [vmem:[%s2 + $0x78] sm:$0xff]
  %v135 = vunpack.c.l.b16 %v103
  %v136 = vunpack.c.h.b16 %v103
  %v137 = vunpack.c.l.b16 %v104
  %v138 = vunpack.c.h.b16 %v104
  %v139 = vunpack.c.l.b16 %v105
  %v140 = vunpack.c.h.b16 %v105
  %v141 = vunpack.c.l.b16 %v106
  %v142 = vunpack.c.h.b16 %v106
  %v143 = vunpack.c.l.b16 %v107
  %v144 = vunpack.c.h.b16 %v107
  %v145 = vunpack.c.l.b16 %v108
  %v146 = vunpack.c.h.b16 %v108
  %v147 = vunpack.c.l.b16 %v109
  %v148 = vunpack.c.h.b16 %v109
  %v149 = vunpack.c.l.b16 %v110
  %v150 = vunpack.c.h.b16 %v110
  %v151 = vunpack.c.l.b16 %v111
  %v152 = vunpack.c.h.b16 %v111
  %v153 = vunpack.c.l.b16 %v112
  %v154 = vunpack.c.h.b16 %v112
  %v155 = vunpack.c.l.b16 %v113
  %v156 = vunpack.c.h.b16 %v113
  %v157 = vunpack.c.l.b16 %v114
  %v158 = vunpack.c.h.b16 %v114
  %v159 = vunpack.c.l.b16 %v115
  %v160 = vunpack.c.h.b16 %v115
  %v161 = vunpack.c.l.b16 %v116
  %v162 = vunpack.c.h.b16 %v116
  %v163 = vunpack.c.l.b16 %v117
  %v164 = vunpack.c.h.b16 %v117
  %v165 = vunpack.c.l.b16 %v118
  %v166 = vunpack.c.h.b16 %v118
  %v167 = vpack.c.b16 %v137, %v135
  %v168 = vpack.c.b16 %v138, %v136
  %v169 = vpack.c.b16 %v141, %v139
  %v170 = vpack.c.b16 %v142, %v140
  %v171 = vpack.c.b16 %v145, %v143
  %v172 = vpack.c.b16 %v146, %v144
  %v173 = vpack.c.b16 %v149, %v147
  %v174 = vpack.c.b16 %v150, %v148
  %v175 = vpack.c.b16 %v153, %v151
  %v176 = vpack.c.b16 %v154, %v152
  %v177 = vpack.c.b16 %v157, %v155
  %v178 = vpack.c.b16 %v158, %v156
  %v179 = vpack.c.b16 %v161, %v159
  %v180 = vpack.c.b16 %v162, %v160
  %v181 = vpack.c.b16 %v165, %v163
  %v182 = vpack.c.b16 %v166, %v164
  %199 = vmatprep.subr.bf16.mxu0 %v168
  %200 = vmatpush1.bf16.msra.mxu0 %v167
  %201 = vmatprep.subr.bf16.mxu0 %v170
  %202 = vmatpush1.bf16.msra.mxu0 %v169
  %203 = vmatprep.subr.bf16.mxu0 %v172
  %204 = vmatpush1.bf16.msra.mxu0 %v171
  %205 = vmatprep.subr.bf16.mxu0 %v174
  %206 = vmatpush1.bf16.msra.mxu0 %v173
  %207 = vmatprep.subr.bf16.mxu0 %v176
  %208 = vmatpush1.bf16.msra.mxu0 %v175
  %209 = vmatprep.subr.bf16.mxu0 %v178
  %210 = vmatpush1.bf16.msra.mxu0 %v177
  %211 = vmatprep.subr.bf16.mxu0 %v180
  %212 = vmatpush1.bf16.msra.mxu0 %v179
  %213 = vmatprep.subr.bf16.mxu0 %v182
  %214 = vmatpush1.bf16.msra.mxu0 %v181
  %215 = vmatprep.subr.bf16.mxu0 0
  %216 = vmatpush1.bf16.msra.mxu0 0
  %217 = vmatprep.subr.bf16.mxu0 0
  %218 = vmatpush1.bf16.msra.mxu0 0
  %219 = vmatprep.subr.bf16.mxu0 0
  %220 = vmatpush1.bf16.msra.mxu0 0
  %221 = vmatprep.subr.bf16.mxu0 0
  %222 = vmatpush1.bf16.msra.mxu0 0
  %223 = vmatprep.subr.bf16.mxu0 0
  %224 = vmatpush1.bf16.msra.mxu0 0
  %225 = vmatprep.subr.bf16.mxu0 0
  %226 = vmatpush1.bf16.msra.mxu0 0
  %227 = vmatprep.subr.bf16.mxu0 0
  %228 = vmatpush1.bf16.msra.mxu0 0
  %229 = vmatprep.subr.bf16.mxu0 0
  %230 = vmatpush1.bf16.msra.mxu0 0
  %231 = vmatprep.mubr.bf16.mxu0 0
  %232 = vmatmul.mubr.bf16.gmra.mrb[0].mxu0 %v101
  %v233 = vpop.f32.mrb[0].mxu0
  %v234 = vadd.f32 0.0, %v233
  %v235 = vpop.f32.mrb[0].mxu0
  %v236 = vadd.f32 0.0, %v235
  %v237 = vpop.f32.mrb[0].mxu0
  %v238 = vadd.f32 0.0, %v237
  %v239 = vpop.f32.mrb[0].mxu0
  %v240 = vadd.f32 0.0, %v239
  %241 = vmatprep.mubr.bf16.mxu0 0
  %242 = vmatmul.mubr.bf16.gmra.mrb[0].mxu0 %v102
  %v243 = vpop.f32.mrb[0].mxu0
  %v244 = vadd.f32 0.0, %v243
  %v245 = vpop.f32.mrb[0].mxu0
  %v246 = vadd.f32 0.0, %v245
  %v247 = vpop.f32.mrb[0].mxu0
  %v248 = vadd.f32 0.0, %v247
  %v249 = vpop.f32.mrb[0].mxu0
  %v250 = vadd.f32 0.0, %v249
  %251 = vdwg.mxu0
  %v252 = vsub.f32 %v234, %v246
  %v253 = vsub.f32 %v238, %v250
  %v254 = vadd.f32 %v236, %v244
  %v255 = vadd.f32 %v240, %v248
  %256 = vst [vmem:[%s5] sm:$0xff] %v252
  %257 = vst [vmem:[%s5 + $0x8] sm:$0xff] %v253
  %s258 = scalar_lea.vmem %s5, 16
  %259 = vst [vmem:[%s258] sm:$0xff] %v254
  %260 = vst [vmem:[%s258 + $0x8] sm:$0xff] %v255
  %v261 = vmul.f32 %v252, %v252
  %v262 = vmul.f32 %v253, %v253
  %v263 = vmul.f32 %v254, %v254
  %v264 = vmul.f32 %v255, %v255
  %v265 = vadd.f32 %v261, %v263
  %v266 = vadd.f32 %v262, %v264
  %v267 = vadd.f32 %v265, %v266
  %v268 = vrot.slane %v267, 4
  %v269 = vadd.f32 %v267, %v268
  %v270 = vrot.slane %v269, 2
  %v271 = vadd.f32 %v269, %v270
  %v272 = vrot.slane %v271, 1
  %v273 = vadd.f32 %v271, %v272
  %v274 = vld [vmem:[%s3] sm:$0xff]
  %v275 = vld [vmem:[%s3 + $0x8] sm:$0xff]
  %v276 = vmul.f32 %v265, %v274
  %v277 = vmul.f32 %v266, %v275
  %v278 = vadd.f32 %v276, %v277
  %v279 = vrot.slane %v278, 4
  %v280 = vadd.f32 %v278, %v279
  %v281 = vrot.slane %v280, 2
  %v282 = vadd.f32 %v280, %v281
  %v283 = vrot.slane %v282, 1
  %v284 = vadd.f32 %v282, %v283
  %v285 = vld [vmem:[%s4] sm:$0x3]
  %v286 = vmul.f32 %v285, %v273
  %vm287 = vcmask 1041408
  %v288 = vsel %vm287, %v286, 0.0
  %289 = vadd.xlane.f32.xlu0 %v288
  %v290 = vpop.xlane.xlu0 %289
  %v291 = vmul.f32 %v285, %v284
  %v292 = vsel %vm287, %v291, 0.0
  %293 = vadd.xlane.f32.xlu0 %v292
  %v294 = vpop.xlane.xlu0 %293
  %v295 = vrcp.pop %v290
  %v296 = vmul.f32 %v294, %v295
  %vm297 = vcmask 1024
  %298 = vst.msk [vmem:[%s6] sm:$0x3] %vm297, %v296
  // Predicated region
  $region22: #{forward.1} parent=0 // pred_check
    _
  $region23: #{forward.1} parent=0 // pred_check_branch
    %300 = sbr.rel (0) target = $region25
  $region24: #{forward.1} parent=0 // pred_region
    _
  $region25: #{forward.1} parent=0 // pred_fallthru
    _
  // Predicated region
  $region26: #{forward.1} parent=0 // pred_check
    _
  $region27: #{forward.1} parent=0 // pred_check_branch
    %302 = sbr.rel (0) target = $region29
  $region28: #{forward.1} parent=0 // pred_region
    _
  $region29: #{forward.1} parent=0 // pred_fallthru
    _
  // Predicated region
  $region30: #{forward.1} parent=0 // pred_check
    _
  $region31: #{forward.1} parent=0 // pred_check_branch
    %304 = sbr.rel (0) target = $region33
  $region32: #{forward.1} parent=0 // pred_region
    _
  $region33: #{forward.1} parent=0 // pred_fallthru
    _
  // Predicated region
  $region34: #{forward.1} parent=0 // pred_check
    _
  $region35: #{forward.1} parent=0 // pred_check_branch
    %306 = sbr.rel (0) target = $region37
  $region36: #{forward.1} parent=0 // pred_region
    _
  $region37: #{forward.1} parent=0 // pred_fallthru
    _

</llo_original>
